<compile_context>
chip_gen: v5e
topology: v5e:2x2
jax: 0.10.0
libtpu: 0.0.40
codegen_flags: <defaults>
</compile_context>

<pallas_src>
import functools
import math

import jax
import jax.numpy as jnp
from jax.experimental import pallas as pl
from jax.experimental.pallas import tpu as pltpu


# ----------------------------------------------------------------------------
# Generation-aware tiling / compile constants
# ----------------------------------------------------------------------------
def _tpu_config():
    """(vmem_limit_bytes, row_tile, vocab_tile) based on TPU generation."""
    try:
        vmem = int(pltpu.get_tpu_info().vmem_capacity_bytes)
    except Exception:
        vmem = 64 * 1024 * 1024                     # assume v7x-sized VMEM
    if vmem >= 100 * 1024 * 1024:                   # v5e / v6e: 128 MiB per TC
        return 96 * 1024 * 1024, 512, 1024
    return 48 * 1024 * 1024, 256, 512               # v7x: 64 MiB per TC


VMEM_LIMIT, ROW_TILE, VOCAB_TILE = _tpu_config()
Q_TILE = 256                      # flash-attention query tile (256-multiple)
KV_TILE = 256                     # flash-attention key/value tile
LN_EPS = 1e-5
NEG_INF = -1e30                   # finite mask fill: no exp(-inf) NaN path


def _sub_tile(n, pref):
    """Tile for a second-to-last (sublane) block dim: divisor of n, mult of 8."""
    if n <= pref:
        return n
    t = (pref // 8) * 8
    while t >= 8:
        if n % t == 0:
            return t
        t -= 8
    return n


def _lane_tile(n, pref):
    """Tile for a last (lane) block dim: divisor of n, multiple of 128."""
    if n <= pref:
        return n
    t = (pref // 128) * 128
    while t >= 128:
        if n % t == 0:
            return t
        t -= 128
    return n


def _compiler_params(sem):
    return pltpu.CompilerParams(dimension_semantics=sem,
                                vmem_limit_bytes=VMEM_LIMIT)


@functools.lru_cache(maxsize=None)
def _single_buffer_mode():
    """pl.Buffered(1) for grid-invariant weight specs, or None if unsupported."""
    try:
        mode = pl.Buffered(1)

        def _probe_kernel(x_ref, o_ref):
            o_ref[...] = x_ref[...] + 1.0

        x = jnp.zeros((8, 128), jnp.float32)
        out = pl.pallas_call(
            _probe_kernel,
            out_shape=jax.ShapeDtypeStruct((8, 128), jnp.float32),
            grid=(2,),
            in_specs=[pl.BlockSpec((8, 128), lambda i: (0, 0),
                                   pipeline_mode=mode)],
            out_specs=pl.BlockSpec((8, 128), lambda i: (0, 0)),
        )(x)
        jax.block_until_ready(out)
        return mode
    except Exception:
        return None


def _wspec(shape, index_map):
    """BlockSpec for a grid-invariant weight: single-buffered when supported."""
    mode = _single_buffer_mode()
    if mode is None:
        return pl.BlockSpec(shape, index_map)
    return pl.BlockSpec(shape, index_map, pipeline_mode=mode)


# ----------------------------------------------------------------------------
# Kernels
# ----------------------------------------------------------------------------
def _layer_norm_f32(x, gamma, beta, eps):
    mu = jnp.mean(x, axis=-1, keepdims=True)
    var = jnp.mean(jnp.square(x - mu), axis=-1, keepdims=True)
    return (x - mu) * jax.lax.rsqrt(var + eps) * gamma + beta


def qkv_kernel(x_ref, wT_ref, b_ref, q_ref, k_ref, v_ref, *, d):
    # One fused (tm, D) @ (D, 3D) matmul; split into bf16 q/k/v outputs.
    y = jnp.dot(x_ref[...], wT_ref[...],
                preferred_element_type=jnp.float32) + b_ref[...]
    q_ref[...] = y[:, :d].astype(q_ref.dtype)
    k_ref[...] = y[:, d:2 * d].astype(k_ref.dtype)
    v_ref[...] = y[:, 2 * d:].astype(v_ref.dtype)


def flash_attn_kernel(q_ref, k_ref, v_ref, o_ref, m_sc, l_sc, acc_sc,
                      *, scale, tq, tk, nhead, dh, causal):
    qi = pl.program_id(1)
    ki = pl.program_id(2)

    @pl.when(ki == 0)
    def _init():
        m_sc[...] = jnp.full(m_sc.shape, NEG_INF, m_sc.dtype)
        l_sc[...] = jnp.zeros(l_sc.shape, l_sc.dtype)
        acc_sc[...] = jnp.zeros(acc_sc.shape, acc_sc.dtype)

    def _update():
        q = q_ref[0]                                     # (tq, D) bf16
        k = k_ref[0]                                     # (tk, D) bf16
        v = v_ref[0]                                     # (tk, D) bf16
        if causal:
            row = qi * tq + jax.lax.broadcasted_iota(jnp.int32, (tq, tk), 0)
            col = ki * tk + jax.lax.broadcasted_iota(jnp.int32, (tq, tk), 1)
            keep = col <= row
        # Per-head online softmax; heads are static lane slices of the fused
        # (tq, D) block (no HBM head transposes, lane-dense output block).
        for h in range(nhead):
            hsl = slice(h * dh, (h + 1) * dh)
            s = jax.lax.dot_general(q[:, hsl], k[:, hsl],
                                    (((1,), (1,)), ((), ())),
                                    preferred_element_type=jnp.float32) * scale
            if causal:
                s = jnp.where(keep, s, NEG_INF)
            m_prev = m_sc[h]                             # (tq, 1)
            m_new = jnp.maximum(m_prev, jnp.max(s, axis=-1, keepdims=True))
            alpha = jnp.exp(m_prev - m_new)
            p = jnp.exp(s - m_new)
            l_sc[h] = alpha * l_sc[h] + jnp.sum(p, axis=-1, keepdims=True)
            acc_sc[h] = alpha * acc_sc[h] + jax.lax.dot_general(
                p.astype(jnp.bfloat16), v[:, hsl], (((1,), (0,)), ((), ())),
                preferred_element_type=jnp.float32)
            m_sc[h] = m_new

    if causal:
        # kv tiles strictly above the diagonal contribute nothing: skip compute
        # (their K/V DMA is also skipped via the clamped index_map).
        pl.when(ki * tk <= qi * tq + (tq - 1))(_update)
    else:
        _update()

    @pl.when(ki == pl.num_programs(2) - 1)
    def _finalize():
        parts = []
        for h in range(nhead):
            inv = pl.reciprocal(l_sc[h], approx=True)    # (tq, 1)
            parts.append(acc_sc[h] * inv)
        o_ref[0] = jnp.concatenate(parts, axis=-1).astype(o_ref.dtype)


def post_attn_kernel(ctx_ref, x_ref, woT_ref, bo_ref, g1_ref, be1_ref,
                     w1T_ref, b1_ref, w2T_ref, b2_ref, g2_ref, be2_ref,
                     o_ref, *, eps):
    # out-proj + residual + LN1 + FFN(ReLU) + residual + LN2, fused per row tile
    proj = jnp.dot(ctx_ref[...], woT_ref[...],
                   preferred_element_type=jnp.float32) + bo_ref[...]
    y = x_ref[...].astype(jnp.float32) + proj
    y = _layer_norm_f32(y, g1_ref[...], be1_ref[...], eps)
    h = jnp.dot(y.astype(jnp.bfloat16), w1T_ref[...],
                preferred_element_type=jnp.float32) + b1_ref[...]
    h = jnp.maximum(h, 0.0)                              # ReLU
    f = jnp.dot(h.astype(jnp.bfloat16), w2T_ref[...],
                preferred_element_type=jnp.float32) + b2_ref[...]
    o_ref[...] = _layer_norm_f32(y + f, g2_ref[...], be2_ref[...], eps
                                 ).astype(o_ref.dtype)


def decoder_lse_kernel(x_ref, wT_ref, b_ref, lse_ref, m_sc, l_sc):
    # Pass 1: stream the vocab dim, accumulate an online log-sum-exp per row.
    j = pl.program_id(1)

    @pl.when(j == 0)
    def _init():
        m_sc[...] = jnp.full(m_sc.shape, NEG_INF, m_sc.dtype)
        l_sc[...] = jnp.zeros(l_sc.shape, l_sc.dtype)

    logits = jnp.dot(x_ref[...], wT_ref[...],
                     preferred_element_type=jnp.float32) + b_ref[...]
    m_prev = m_sc[...]
    m_new = jnp.maximum(m_prev, jnp.max(logits, axis=-1, keepdims=True))
    l_sc[...] = l_sc[...] * jnp.exp(m_prev - m_new) + jnp.sum(
        jnp.exp(logits - m_new), axis=-1, keepdims=True)
    m_sc[...] = m_new

    @pl.when(j == pl.num_programs(1) - 1)
    def _finalize():
        lse_ref[...] = m_sc[...] + jnp.log(l_sc[...])


def decoder_logprob_kernel(x_ref, wT_ref, b_ref, lse_ref, o_ref):
    # Pass 2: recompute the row-tile logits (no f32 logits HBM round-trip)
    # and emit bf16 log-probs.
    logits = jnp.dot(x_ref[...], wT_ref[...],
                     preferred_element_type=jnp.float32) + b_ref[...]
    o_ref[...] = (logits - lse_ref[...]).astype(o_ref.dtype)


# ----------------------------------------------------------------------------
# Wrappers (gridded pallas_calls)
# ----------------------------------------------------------------------------
def qkv_proj(x, wqkvT, b):
    M, D = x.shape
    tm = _sub_tile(M, ROW_TILE)
    return pl.pallas_call(
        functools.partial(qkv_kernel, d=D),
        out_shape=tuple(jax.ShapeDtypeStruct((M, D), jnp.bfloat16)
                        for _ in range(3)),
        grid=(M // tm,),
        in_specs=[pl.BlockSpec((tm, D), lambda i: (i, 0)),
                  _wspec((D, 3 * D), lambda i: (0, 0)),
                  _wspec((1, 3 * D), lambda i: (0, 0))],
        out_specs=tuple(pl.BlockSpec((tm, D), lambda i: (i, 0))
                        for _ in range(3)),
        compiler_params=_compiler_params(("parallel",)),
    )(x, wqkvT, b)


def flash_attention(q, k, v, *, nhead, causal, scale):
    B, S, D = q.shape
    dh = D // nhead
    tq = _sub_tile(S, Q_TILE)
    tk = _sub_tile(S, KV_TILE)
    kern = functools.partial(flash_attn_kernel, scale=scale, tq=tq, tk=tk,
                             nhead=nhead, dh=dh, causal=causal)

    def q_map(b, qi, ki):
        return (b, qi, 0)

    if causal:
        def kv_map(b, qi, ki):
            # Above-diagonal steps reuse the last valid kv block index, so no
            # new K/V DMA is issued for steps whose compute is skipped.
            last = (qi * tq + (tq - 1)) // tk
            return (b, jnp.minimum(ki, last), 0)
    else:
        def kv_map(b, qi, ki):
            return (b, ki, 0)

    return pl.pallas_call(
        kern,
        out_shape=jax.ShapeDtypeStruct((B, S, D), jnp.bfloat16),
        grid=(B, S // tq, S // tk),
        in_specs=[pl.BlockSpec((1, tq, D), q_map),
                  pl.BlockSpec((1, tk, D), kv_map),
                  pl.BlockSpec((1, tk, D), kv_map)],
        out_specs=pl.BlockSpec((1, tq, D), q_map),
        scratch_shapes=[pltpu.VMEM((nhead, tq, 1), jnp.float32),
                        pltpu.VMEM((nhead, tq, 1), jnp.float32),
                        pltpu.VMEM((nhead, tq, dh), jnp.float32)],
        compiler_params=_compiler_params(("parallel", "parallel", "arbitrary")),
    )(q, k, v)


def post_attn_ffn(ctx, x, lp):
    M, D = x.shape
    Hd = lp['w1_T'].shape[1]
    tm = _sub_tile(M, ROW_TILE)
    return pl.pallas_call(
        functools.partial(post_attn_kernel, eps=LN_EPS),
        out_shape=jax.ShapeDtypeStruct((M, D), jnp.bfloat16),
        grid=(M // tm,),
        in_specs=[pl.BlockSpec((tm, D), lambda i: (i, 0)),
                  pl.BlockSpec((tm, D), lambda i: (i, 0)),
                  _wspec((D, D), lambda i: (0, 0)),
                  _wspec((1, D), lambda i: (0, 0)),
                  _wspec((1, D), lambda i: (0, 0)),
                  _wspec((1, D), lambda i: (0, 0)),
                  _wspec((D, Hd), lambda i: (0, 0)),
                  _wspec((1, Hd), lambda i: (0, 0)),
                  _wspec((Hd, D), lambda i: (0, 0)),
                  _wspec((1, D), lambda i: (0, 0)),
                  _wspec((1, D), lambda i: (0, 0)),
                  _wspec((1, D), lambda i: (0, 0))],
        out_specs=pl.BlockSpec((tm, D), lambda i: (i, 0)),
        compiler_params=_compiler_params(("parallel",)),
    )(ctx, x, lp['wo_T'], lp['out_proj_b'], lp['ln1_g'], lp['ln1_b'],
      lp['w1_T'], lp['ffn_b1'], lp['w2_T'], lp['ffn_b2'],
      lp['ln2_g'], lp['ln2_b'])


def decoder_log_softmax(x, dec_wT, dec_b):
    M, D = x.shape
    V = dec_wT.shape[1]
    tm = _sub_tile(M, ROW_TILE)
    tv = _lane_tile(V, VOCAB_TILE)
    grid = (M // tm, V // tv)
    lse = pl.pallas_call(
        decoder_lse_kernel,
        out_shape=jax.ShapeDtypeStruct((M, 1), jnp.float32),
        grid=grid,
        in_specs=[pl.BlockSpec((tm, D), lambda i, j: (i, 0)),
                  pl.BlockSpec((D, tv), lambda i, j: (0, j)),
                  pl.BlockSpec((1, tv), lambda i, j: (0, j))],
        out_specs=pl.BlockSpec((tm, 1), lambda i, j: (i, 0)),
        scratch_shapes=[pltpu.VMEM((tm, 1), jnp.float32),
                        pltpu.VMEM((tm, 1), jnp.float32)],
        compiler_params=_compiler_params(("parallel", "arbitrary")),
    )(x, dec_wT, dec_b)
    return pl.pallas_call(
        decoder_logprob_kernel,
        out_shape=jax.ShapeDtypeStruct((M, V), jnp.bfloat16),
        grid=grid,
        in_specs=[pl.BlockSpec((tm, D), lambda i, j: (i, 0)),
                  pl.BlockSpec((D, tv), lambda i, j: (0, j)),
                  pl.BlockSpec((1, tv), lambda i, j: (0, j)),
                  pl.BlockSpec((tm, 1), lambda i, j: (i, 0))],
        out_specs=pl.BlockSpec((tm, tv), lambda i, j: (i, j)),
        compiler_params=_compiler_params(("parallel", "parallel")),
    )(x, dec_wT, dec_b, lse)


def encoder_layer(x, lp, *, nhead, S, B, causal):
    # x: (B*S, D) bf16, rows batch-major (contiguous per-batch sequences).
    M, D = x.shape
    dh = D // nhead
    q, k, v = qkv_proj(x, lp['wqkv_T'], lp['in_proj_b'])   # each (M, D) bf16
    q = q.reshape(B, S, D)                                 # free reshapes
    k = k.reshape(B, S, D)
    v = v.reshape(B, S, D)
    ctx = flash_attention(q, k, v, nhead=nhead, causal=causal,
                          scale=dh ** -0.5)                # (B, S, D) bf16
    ctx = ctx.reshape(M, D)
    return post_attn_ffn(ctx, x, lp)                       # (M, D) bf16


# ----------------------------------------------------------------------------
# Model setup (deterministic synthetic params)
# ----------------------------------------------------------------------------
def make_positional_encoding(max_len, d_model):
    position = jnp.arange(max_len, dtype=jnp.float32)[:, None]
    div_term = jnp.exp(jnp.arange(0, d_model, 2, dtype=jnp.float32)
                       * (-math.log(10000.0) / d_model))
    pe = jnp.zeros((max_len, d_model), dtype=jnp.float32)
    pe = pe.at[:, 0::2].set(jnp.sin(position * div_term))
    pe = pe.at[:, 1::2].set(jnp.cos(position * div_term))
    return pe[:, None, :]                                  # (max_len, 1, d_model)


def init_params(key, ntoken, ninp, nhead, nhid, nlayers):
    def u(k, shape, lim):
        return jax.random.uniform(k, shape, jnp.float32, -lim, lim)

    keys = jax.random.split(key, 2 + 4 * nlayers)
    params = {
        'emb': u(keys[0], (ntoken, ninp), 0.1),
        'dec_w': u(keys[1], (ntoken, ninp), 0.1),
        'dec_b': jnp.zeros((1, ntoken), jnp.float32),
        'layers': [],
    }
    for l in range(nlayers):
        k0, k1, k2, k3 = keys[2 + 4 * l: 6 + 4 * l]
        lim_attn = 1.0 / math.sqrt(ninp)
        lim_ffn1 = 1.0 / math.sqrt(ninp)
        lim_ffn2 = 1.0 / math.sqrt(nhid)
        params['layers'].append({
            'in_proj_w': u(k0, (3 * ninp, ninp), lim_attn),
            'in_proj_b': jnp.zeros((1, 3 * ninp), jnp.float32),
            'out_proj_w': u(k1, (ninp, ninp), lim_attn),
            'out_proj_b': jnp.zeros((1, ninp), jnp.float32),
            'ln1_g': jnp.ones((1, ninp), jnp.float32),
            'ln1_b': jnp.zeros((1, ninp), jnp.float32),
            'ffn_w1': u(k2, (nhid, ninp), lim_ffn1),
            'ffn_b1': jnp.zeros((1, nhid), jnp.float32),
            'ffn_w2': u(k3, (ninp, nhid), lim_ffn2),
            'ffn_b2': jnp.zeros((1, ninp), jnp.float32),
            'ln2_g': jnp.ones((1, ninp), jnp.float32),
            'ln2_b': jnp.zeros((1, ninp), jnp.float32),
        })
    return params


def prepare_params(params):
    """Pre-transpose weights ONCE (host side); MXU operands stored as bf16."""
    # TODO(synk): optionally store decoder/FFN weights as fp8 + per-channel
    # scales on v7x (2x MXU / half weight DMA); not drop-in numerically.
    p = dict(params)
    p['dec_w_T'] = jnp.asarray(params['dec_w'].T, jnp.bfloat16)      # (D, V)
    layers = []
    for lp in params['layers']:
        l = dict(lp)
        l['wqkv_T'] = jnp.asarray(lp['in_proj_w'].T, jnp.bfloat16)   # (D, 3D)
        l['wo_T'] = jnp.asarray(lp['out_proj_w'].T, jnp.bfloat16)    # (D, D)
        l['w1_T'] = jnp.asarray(lp['ffn_w1'].T, jnp.bfloat16)        # (D, nhid)
        l['w2_T'] = jnp.asarray(lp['ffn_w2'].T, jnp.bfloat16)        # (nhid, D)
        layers.append(l)
    p['layers'] = layers
    return p


def transformer_lm_forward(src, params, *, ninp, nhead, ntoken, has_mask=True):
    # src: (S, B) int32 token ids (PyTorch seq-first convention)
    S, B = src.shape
    D = ninp
    # Embedding gather + sqrt(ninp) scale + sinusoidal PE: memory-bound glue in
    # plain JAX. One-time relayout to batch-major rows so no per-layer head
    # transposes are needed; activations stored bf16 between kernels.
    pe = make_positional_encoding(S, D)                    # (S, 1, D)
    x = params['emb'][src] * math.sqrt(D) + pe             # (S, B, D) f32
    x = jnp.transpose(x, (1, 0, 2)).reshape(B * S, D).astype(jnp.bfloat16)
    # TODO(synk): dropout layers are identity (inference semantics).
    for lp in params['layers']:
        x = encoder_layer(x, lp, nhead=nhead, S=S, B=B, causal=has_mask)
    # Back to seq-major rows on the small (M, D) tensor so the big (M, V)
    # log-prob output needs no transpose at all.
    x = x.reshape(B, S, D).transpose(1, 0, 2).reshape(S * B, D)
    # TODO(synk): longer-term, collapse the per-layer Python loop into one
    # pallas_call with a layer grid axis and VMEM-resident activations.
    logp = decoder_log_softmax(x, params['dec_w_T'], params['dec_b'])
    return logp.reshape(S, B, ntoken)                      # (S, B, V) bf16 log-probs


# ----------------------------------------------------------------------------
if __name__ == "__main__":
    ntoken, ninp, nhead, nhid, nlayers = 64, 32, 4, 64, 2
    S, B = 8, 2

    key = jax.random.PRNGKey(0)
    pkey, dkey = jax.random.split(key)
    params = prepare_params(init_params(pkey, ntoken, ninp, nhead, nhid, nlayers))
    src = jax.random.randint(dkey, (S, B), 0, ntoken, dtype=jnp.int32)

    out = transformer_lm_forward(src, params, ninp=ninp, nhead=nhead, ntoken=ntoken)
    out = jax.block_until_ready(out)

    assert out.shape == (S, B, ntoken)
    # log_softmax sanity: rows sum to ~1 in prob space (tolerance covers the
    # bf16 storage of the final log-probs).
    probs = jnp.sum(jnp.exp(out.astype(jnp.float32)), axis=-1)
    assert bool(jnp.all(jnp.abs(probs - 1.0) < 2e-2))
    print("KERNEL_OK")
</pallas_src>

<mosaic_0001>
module attributes {stable_mosaic.version = 11 : i64} {
  func.func @_probe_kernel(%arg0: i32, %arg1: memref<8x128xf32, #tpu.memory_space<vmem>>, %arg2: memref<8x128xf32, #tpu.memory_space<vmem>>) attributes {dimension_semantics = [#tpu.dimension_semantics<arbitrary>], iteration_bounds = array<i64: 2>, scalar_prefetch = 0 : i64, scratch_operands = 0 : i64, tpu.core_type = #tpu.core_type<tc>, window_params = [{pipeline_mode = #tpu.pipeline_mode<synchronous>, transform_indices = @transform_0, window_bounds = array<i64: 8, 128>}, {pipeline_mode = #tpu.pipeline_mode<synchronous>, transform_indices = @transform_1, window_bounds = array<i64: 8, 128>}]} {
    %c0 = arith.constant 0 : index
    %c0_0 = arith.constant 0 : index
    %0 = vector.load %arg1[%c0, %c0_0] : memref<8x128xf32, #tpu.memory_space<vmem>>, vector<8x128xf32>
    %cst = arith.constant 1.000000e+00 : f32
    %1 = vector.broadcast %cst : f32 to vector<8x128xf32>
    %2 = arith.addf %0, %1 : vector<8x128xf32>
    %c0_1 = arith.constant 0 : index
    %c0_2 = arith.constant 0 : index
    %3 = vector.load %arg2[%c0_1, %c0_2] : memref<8x128xf32, #tpu.memory_space<vmem>>, vector<8x128xf32>
    tpu.vector_store %arg2[%c0_1, %c0_2], %2 {strides = array<i32>} : memref<8x128xf32, #tpu.memory_space<vmem>>, vector<8x128xf32>,
    return
  }
  func.func @transform_0(%arg0: i32) -> (i32, i32) {
    %c0_i32 = arith.constant 0 : i32
    %c0_i32_0 = arith.constant 0 : i32
    %c0_i32_1 = arith.constant 0 : i32
    return %c0_i32, %c0_i32_0 : i32, i32
  }
  func.func @transform_1(%arg0: i32) -> (i32, i32) {
    %c0_i32 = arith.constant 0 : i32
    %c0_i32_0 = arith.constant 0 : i32
    %c0_i32_1 = arith.constant 0 : i32
    return %c0_i32, %c0_i32_0 : i32, i32
  }
}

module attributes {stable_mosaic.version = 11 : i64} {
  func.func @qkv_kernel(%arg0: i32, %arg1: memref<16x32xbf16, #tpu.memory_space<vmem>>, %arg2: memref<32x96xbf16, #tpu.memory_space<vmem>>, %arg3: memref<1x96xf32, #tpu.memory_space<vmem>>, %arg4: memref<16x32xbf16, #tpu.memory_space<vmem>>, %arg5: memref<16x32xbf16, #tpu.memory_space<vmem>>, %arg6: memref<16x32xbf16, #tpu.memory_space<vmem>>) attributes {dimension_semantics = [#tpu.dimension_semantics<parallel>], iteration_bounds = array<i64: 1>, scalar_prefetch = 0 : i64, scratch_operands = 0 : i64, tpu.core_type = #tpu.core_type<tc>, window_params = [{transform_indices = @transform_0, window_bounds = array<i64: 16, 32>}, {pipeline_mode = #tpu.pipeline_mode<synchronous>, transform_indices = @transform_1, window_bounds = array<i64: 32, 96>}, {pipeline_mode = #tpu.pipeline_mode<synchronous>, transform_indices = @transform_2, window_bounds = array<i64: 1, 96>}, {transform_indices = @transform_3, window_bounds = array<i64: 16, 32>}, {transform_indices = @transform_4, window_bounds = array<i64: 16, 32>}, {transform_indices = @transform_5, window_bounds = array<i64: 16, 32>}]} {
    %c0 = arith.constant 0 : index
    %c0_0 = arith.constant 0 : index
    %0 = vector.load %arg1[%c0, %c0_0] : memref<16x32xbf16, #tpu.memory_space<vmem>>, vector<16x32xbf16>
    %c0_1 = arith.constant 0 : index
    %c0_2 = arith.constant 0 : index
    %1 = vector.load %arg2[%c0_1, %c0_2] : memref<32x96xbf16, #tpu.memory_space<vmem>>, vector<32x96xbf16>
    %cst = arith.constant dense<0.000000e+00> : vector<16x96xf32>
    %2 = tpu.matmul %0, %1, %cst {dimension_numbers = #tpu.dot_dimension_numbers<[1], [0], [0], [1], [0, 0, 1, 1], [], []>} : vector<16x32xbf16>, vector<32x96xbf16>, vector<16x96xf32> -> vector<16x96xf32>
    %c0_3 = arith.constant 0 : index
    %c0_4 = arith.constant 0 : index
    %3 = vector.load %arg3[%c0_3, %c0_4] : memref<1x96xf32, #tpu.memory_space<vmem>>, vector<1x96xf32>
    %4 = vector.broadcast %3 : vector<1x96xf32> to vector<16x96xf32>
    %5 = arith.addf %2, %4 : vector<16x96xf32>
    %6 = vector.extract_strided_slice %5 {offsets = [0, 0], sizes = [16, 32], strides = [1, 1]} : vector<16x96xf32> to vector<16x32xf32>
    %7 = arith.truncf %6 : vector<16x32xf32> to vector<16x32xbf16>
    %c0_5 = arith.constant 0 : index
    %c0_6 = arith.constant 0 : index
    %8 = vector.load %arg4[%c0_5, %c0_6] : memref<16x32xbf16, #tpu.memory_space<vmem>>, vector<16x32xbf16>
    tpu.vector_store %arg4[%c0_5, %c0_6], %7 {strides = array<i32>} : memref<16x32xbf16, #tpu.memory_space<vmem>>, vector<16x32xbf16>,
    %9 = vector.extract_strided_slice %5 {offsets = [0, 32], sizes = [16, 32], strides = [1, 1]} : vector<16x96xf32> to vector<16x32xf32>
    %10 = arith.truncf %9 : vector<16x32xf32> to vector<16x32xbf16>
    %c0_7 = arith.constant 0 : index
    %c0_8 = arith.constant 0 : index
    %11 = vector.load %arg5[%c0_7, %c0_8] : memref<16x32xbf16, #tpu.memory_space<vmem>>, vector<16x32xbf16>
    tpu.vector_store %arg5[%c0_7, %c0_8], %10 {strides = array<i32>} : memref<16x32xbf16, #tpu.memory_space<vmem>>, vector<16x32xbf16>,
    %12 = vector.extract_strided_slice %5 {offsets = [0, 64], sizes = [16, 32], strides = [1, 1]} : vector<16x96xf32> to vector<16x32xf32>
    %13 = arith.truncf %12 : vector<16x32xf32> to vector<16x32xbf16>
    %c0_9 = arith.constant 0 : index
    %c0_10 = arith.constant 0 : index
    %14 = vector.load %arg6[%c0_9, %c0_10] : memref<16x32xbf16, #tpu.memory_space<vmem>>, vector<16x32xbf16>
    tpu.vector_store %arg6[%c0_9, %c0_10], %13 {strides = array<i32>} : memref<16x32xbf16, #tpu.memory_space<vmem>>, vector<16x32xbf16>,
    return
  }
  func.func @transform_0(%arg0: i32) -> (i32, i32) {
    %c0_i32 = arith.constant 0 : i32
    %c0_i32_0 = arith.constant 0 : i32
    return %arg0, %c0_i32 : i32, i32
  }
  func.func @transform_1(%arg0: i32) -> (i32, i32) {
    %c0_i32 = arith.constant 0 : i32
    %c0_i32_0 = arith.constant 0 : i32
    %c0_i32_1 = arith.constant 0 : i32
    return %c0_i32, %c0_i32_0 : i32, i32
  }
  func.func @transform_2(%arg0: i32) -> (i32, i32) {
    %c0_i32 = arith.constant 0 : i32
    %c0_i32_0 = arith.constant 0 : i32
    %c0_i32_1 = arith.constant 0 : i32
    return %c0_i32, %c0_i32_0 : i32, i32
  }
  func.func @transform_3(%arg0: i32) -> (i32, i32) {
    %c0_i32 = arith.constant 0 : i32
    %c0_i32_0 = arith.constant 0 : i32
    return %arg0, %c0_i32 : i32, i32
  }
  func.func @transform_4(%arg0: i32) -> (i32, i32) {
    %c0_i32 = arith.constant 0 : i32
    %c0_i32_0 = arith.constant 0 : i32
    return %arg0, %c0_i32 : i32, i32
  }
  func.func @transform_5(%arg0: i32) -> (i32, i32) {
    %c0_i32 = arith.constant 0 : i32
    %c0_i32_0 = arith.constant 0 : i32
    return %arg0, %c0_i32 : i32, i32
  }
}

</mosaic_0001>

<llo_original>
// kernel: tpu_custom_call.1
$region0: #{tpu_custom_call.1}
  #allocation0 [shape = 'u32[]', space=smem, size = 0x4, offset = 0x4, fixed_abs, tag = 'smem constant byte address 0x4 - core index']
  #allocation1 [shape = 'u32[72,128]{1,0:T(1,128)}', space=vmem, size = 0x9000, scoped, tag = 'internal scratch']
  %s0 = inlined_call_operand.hbm [shape: f32[8,128], index: 0, kind: input, shape index: {}]
  %s1 = inlined_call_operand.hbm [shape: f32[8,128], index: 1, kind: output, shape index: {}]
  %s2 = sld [smem:[#allocation0]]
  $region41: #{tpu_custom_call.1} parent=0
    _
  %s4 = ssub.s32 1, %s2
  %s5 = scalar_select 0, %s4, %s2
  $region1: #{tpu_custom_call.1} parent=0
    #allocation2 [shape = 'u8[4096]{0}', space=vmem, size = 0x1000, scoped, tag = 'input window, operand 0, single buffered']
    #allocation3 [shape = 's32[2]{0}', space=sflag, size = 0x8, scoped, tag = 'scoped memory for tpu_custom_call.1']
    #allocation4 [shape = 's32[2]{0}', space=sflag, size = 0x8, scoped, tag = 'scoped memory for tpu_custom_call.1']
    #allocation5 [shape = 'u8[4096]{0}', space=vmem, size = 0x1000, scoped, tag = 'output window, operand 0, single buffered']
    %6 = vsyncpa [#allocation3], 0
    %7 = vsyncpa [#allocation4], 0
    loop: start=0, step=1, limit=4
    $region2: #{tpu_custom_call.1} parent=1 // loop_pre_header
      _
    $region3: #{tpu_custom_call.1} parent=1 // loop_header
      %s9 = sphi 0, %s13
      %p10 = scmp.ge.s32.totalorder %s9, 4
      %s17 = sphi 0, %s17
      %s19 = sphi 0, %s17
      %s20 = sphi 0, %s19
      %s34 = sphi 0, %s20
      %s38 = sphi 0, %s38
      %s40 = sphi 0, %s38
      %s41 = sphi 0, %s40
      %s55 = sphi 0, %s41
    $region4: #{tpu_custom_call.1} parent=1 // loop_header_branch
      %12 = sbr.rel (%p10) target = $region8
    $region5: #{tpu_custom_call.1} parent=1 // loop_body
      %s14 = ssub.s32 %s9, 1
      %s15 = ssub.s32 %s9, 2
      %s16 = sadd.s32 %s9, 1
      %s18 = sadd.s32 %s17, 1
      %p21 = scmp.eq.s32.totalorder %s9, 1
      %p22 = scmp.ne.s32.totalorder %s17, %s19
      %p23 = scmp.eq.s32.totalorder %s9, 0
      %p24 = por %p22, %p23
      %p25 = scmp.ne.s32.totalorder %s17, %s19
      %p26 = scmp.eq.s32.totalorder %s14, 1
      %p27 = por %p25, %p26
      %p28 = scmp.ne.s32.totalorder %s19, %s20
      %p29 = scmp.eq.s32.totalorder %s14, 0
      %p30 = por %p28, %p29
      %p31 = scmp.ne.s32.totalorder %s19, %s20
      %p32 = scmp.eq.s32.totalorder %s15, 1
      %p33 = por %p31, %p32
      %p35 = scmp.ne.s32.totalorder %s20, %s34
      %p36 = scmp.eq.s32.totalorder %s15, 0
      %p37 = por %p35, %p36
      %s39 = sadd.s32 %s38, 1
      %p42 = scmp.eq.s32.totalorder %s9, 1
      %p43 = scmp.ne.s32.totalorder %s38, %s40
      %p44 = scmp.eq.s32.totalorder %s9, 0
      %p45 = por %p43, %p44
      %p46 = scmp.ne.s32.totalorder %s38, %s40
      %p47 = scmp.eq.s32.totalorder %s14, 1
      %p48 = por %p46, %p47
      %p49 = scmp.ne.s32.totalorder %s40, %s41
      %p50 = scmp.eq.s32.totalorder %s14, 0
      %p51 = por %p49, %p50
      %p52 = scmp.ne.s32.totalorder %s40, %s41
      %p53 = scmp.eq.s32.totalorder %s15, 1
      %p54 = por %p52, %p53
      %p56 = scmp.ne.s32.totalorder %s41, %s55
      %p57 = scmp.eq.s32.totalorder %s15, 0
      %p58 = por %p56, %p57
      %p59 = scmp.le.s32.totalorder 1, %s9
      %p60 = scmp.lt.s32.totalorder %s9, 3
      %p61 = pnand %p59, %p60
      %p62 = pneg %p61
      // Predicated region
      $region9: #{tpu_custom_call.1} parent=5 // pred_check
        _
      $region10: #{tpu_custom_call.1} parent=5 // pred_check_branch
        %64 = sbr.rel (%p61) target = $region12
      $region11: #{tpu_custom_call.1} parent=5 // pred_region
        %s65 = ssub.s32 %s9, 1
        // Predicated region
        $region13: #{tpu_custom_call.1} parent=11 // pred_check
          %p66 = pneg %p30
        $region14: #{tpu_custom_call.1} parent=11 // pred_check_branch
          %68 = sbr.rel (%p66) target = $region16
        $region15: #{tpu_custom_call.1} parent=11 // pred_region
          %70 = vsyncadd [#allocation3], 0
          %s72 = sshll.u32 %s0, 4
          %s73 = int_to_ptr.hbm [resolvable:$true] %s72
          %s74 = sshll.u32 [#allocation2], 4
          %s75 = int_to_ptr.vmem [resolvable:$true] %s74
          %77 = dma.hbm_to_vmem [thread:$0]  %s73, 128, %s75, [#allocation3]
        $region16: #{tpu_custom_call.1} parent=11 // pred_fallthru
          _
      $region12: #{tpu_custom_call.1} parent=5 // pred_fallthru
        _
      %p78 = scmp.lt.s32.totalorder %s9, 2
      // Predicated region
      $region17: #{tpu_custom_call.1} parent=5 // pred_check
        %p79 = pneg %p78
      $region18: #{tpu_custom_call.1} parent=5 // pred_check_branch
        %81 = sbr.rel (%p79) target = $region20
      $region19: #{tpu_custom_call.1} parent=5 // pred_region
        _
      $region20: #{tpu_custom_call.1} parent=5 // pred_fallthru
        _
      %p82 = scmp.le.s32.totalorder 1, %s9
      %p83 = scmp.lt.s32.totalorder %s9, 3
      %p84 = pnand %p82, %p83
      %p85 = pneg %p84
      // Predicated region
      $region21: #{tpu_custom_call.1} parent=5 // pred_check
        _
      $region22: #{tpu_custom_call.1} parent=5 // pred_check_branch
        %87 = sbr.rel (%p84) target = $region24
      $region23: #{tpu_custom_call.1} parent=5 // pred_region
        %s88 = ssub.s32 %s9, 1
        // Predicated region
        $region25: #{tpu_custom_call.1} parent=23 // pred_check
          %p89 = pneg %p30
        $region26: #{tpu_custom_call.1} parent=23 // pred_check_branch
          %91 = sbr.rel (%p89) target = $region28
        $region27: #{tpu_custom_call.1} parent=23 // pred_region
          %93 = dma.done [#allocation3], 128
        $region28: #{tpu_custom_call.1} parent=23 // pred_fallthru
          _
        %p94 = pneg %p30
        %p95 = pneg %p27
        %p96 = pneg %p51
        %p97 = pneg %p48
        %v98 = vld [vmem:[#allocation2] sm:$0xff]
        %v99 = vadd.f32 %v98, 1.0
        %100 = vst [vmem:[#allocation5] sm:$0xff] %v99
        // Predicated region
        $region29: #{tpu_custom_call.1} parent=23 // pred_check
          %p101 = pneg %p48
        $region30: #{tpu_custom_call.1} parent=23 // pred_check_branch
          %103 = sbr.rel (%p101) target = $region32
        $region31: #{tpu_custom_call.1} parent=23 // pred_region
          %105 = vsyncadd [#allocation4], 0
          %s107 = sshll.u32 [#allocation5], 4
          %s108 = int_to_ptr.vmem [resolvable:$true] %s107
          %s109 = sshll.u32 %s1, 4
          %s110 = int_to_ptr.hbm [resolvable:$true] %s109
          %112 = dma.vmem_to_hbm [thread:$0]  %s108, 128, %s110, [#allocation4]
        $region32: #{tpu_custom_call.1} parent=23 // pred_fallthru
          _
        // Predicated region
        $region33: #{tpu_custom_call.1} parent=23 // pred_check
          %p113 = pneg %p48
        $region34: #{tpu_custom_call.1} parent=23 // pred_check_branch
          %115 = sbr.rel (%p113) target = $region36
        $region35: #{tpu_custom_call.1} parent=23 // pred_region
          %117 = dma.done [#allocation4], 128
        $region36: #{tpu_custom_call.1} parent=23 // pred_fallthru
          _
      $region24: #{tpu_custom_call.1} parent=5 // pred_fallthru
        _
      %p118 = scmp.le.s32.totalorder 2, %s9
      // Predicated region
      $region37: #{tpu_custom_call.1} parent=5 // pred_check
        %p119 = pneg %p118
      $region38: #{tpu_custom_call.1} parent=5 // pred_check_branch
        %121 = sbr.rel (%p119) target = $region40
      $region39: #{tpu_custom_call.1} parent=5 // pred_region
        %s122 = ssub.s32 %s9, 2
      $region40: #{tpu_custom_call.1} parent=5 // pred_fallthru
        _
    $region6: #{tpu_custom_call.1} parent=1 // loop_footer
      %s13 = sadd.s32 1, %s9
    $region7: #{tpu_custom_call.1} parent=1 // loop_footer_branch
      %8 = sbr.rel target = $region3
    $region8: #{tpu_custom_call.1} parent=1 // loop_exit
      _
    %123 = vsyncpa [#allocation3], 1
    %s124 = scalar_lea.sflag [#allocation3], 1
    %125 = vsyncpa %s124, 1
    %126 = vsyncpa [#allocation4], 1
    %s127 = scalar_lea.sflag [#allocation4], 1
    %128 = vsyncpa %s127, 1

// kernel: tpu_custom_call.1
$region0: #{tpu_custom_call.1}
  #allocation0 [shape = 'u32[]', space=smem, size = 0x4, offset = 0x4, fixed_abs, tag = 'smem constant byte address 0x4 - core index']
  #allocation1 [shape = 'u32[72,128]{1,0:T(1,128)}', space=vmem, size = 0x9000, scoped, tag = 'internal scratch']
  %s0 = inlined_call_operand.hbm [shape: bf16[16,32], index: 0, kind: input, shape index: {}]
  %s1 = inlined_call_operand.hbm [shape: bf16[32,96], index: 1, kind: input, shape index: {}]
  %s2 = inlined_call_operand.vmem [shape: f32[1,96], index: 2, kind: input, shape index: {}]
  %s3 = inlined_call_operand.hbm [shape: bf16[16,32], index: 3, kind: output, shape index: {0}]
  %s4 = inlined_call_operand.hbm [shape: bf16[16,32], index: 4, kind: output, shape index: {1}]
  %s5 = inlined_call_operand.hbm [shape: bf16[16,32], index: 5, kind: output, shape index: {2}]
  %6 = xla_tuple %s3, %s4, %s5
  %s7 = sld [smem:[#allocation0]]
  $region46: #{tpu_custom_call.1} parent=0
    _
  %s9 = ssub.s32 1, %s7
  %s10 = scalar_select 0, %s9, %s7
  $region1: #{tpu_custom_call.1} parent=0
    #allocation2 [shape = 'u8[4096]{0}', space=vmem, size = 0x1000, scoped, tag = 'input window, operand 0, single buffered']
    #allocation3 [shape = 's32[1]{0}', space=sflag, size = 0x4, scoped, tag = 'scoped memory for tpu_custom_call.1']
    #allocation4 [shape = 's32[1]{0}', space=sflag, size = 0x4, scoped, tag = 'scoped memory for tpu_custom_call.1']
    #allocation5 [shape = 'u8[8192]{0}', space=vmem, size = 0x2000, scoped, tag = 'input window, operand 1, single buffered']
    #allocation6 [shape = 's32[1]{0}', space=sflag, size = 0x4, scoped, tag = 'scoped memory for tpu_custom_call.1']
    #allocation7 [shape = 'u8[4096]{0}', space=vmem, size = 0x1000, scoped, tag = 'output window, operand 0, single buffered']
    #allocation8 [shape = 'u8[4096]{0}', space=vmem, size = 0x1000, scoped, tag = 'output window, operand 1, single buffered']
    #allocation9 [shape = 's32[1]{0}', space=sflag, size = 0x4, scoped, tag = 'scoped memory for tpu_custom_call.1']
    #allocation10 [shape = 'u8[4096]{0}', space=vmem, size = 0x1000, scoped, tag = 'output window, operand 2, single buffered']
    %11 = vsyncpa [#allocation3], 0
    %12 = vsyncpa [#allocation6], 0
    %13 = vsyncpa [#allocation4], 0
    %14 = vsyncpa [#allocation9], 0
    // Predicated region
    $region2: #{tpu_custom_call.1} parent=1 // pred_check
      _
    $region3: #{tpu_custom_call.1} parent=1 // pred_check_branch
      %16 = sbr.rel (0) target = $region5
    $region4: #{tpu_custom_call.1} parent=1 // pred_region
      %18 = vsyncadd [#allocation3], 0
      %s19 = sshll.u32 %s0, 4
      %s20 = int_to_ptr.hbm [resolvable:$true] %s19
      %s21 = sshll.u32 [#allocation2], 4
      %s22 = int_to_ptr.vmem [resolvable:$true] %s21
      %27 = dma.hbm_to_vmem [thread:$0]  %s20, 128, %s22, [#allocation3], 64, 64, 4
    $region5: #{tpu_custom_call.1} parent=1 // pred_fallthru
      _
    // Predicated region
    $region6: #{tpu_custom_call.1} parent=1 // pred_check
      _
    $region7: #{tpu_custom_call.1} parent=1 // pred_check_branch
      %29 = sbr.rel (0) target = $region9
    $region8: #{tpu_custom_call.1} parent=1 // pred_region
      %31 = vsyncadd [#allocation6], 0
      %s32 = sshll.u32 %s1, 4
      %s33 = int_to_ptr.hbm [resolvable:$true] %s32
      %s34 = sshll.u32 [#allocation5], 4
      %s35 = int_to_ptr.vmem [resolvable:$true] %s34
      %40 = dma.hbm_to_vmem [thread:$0]  %s33, 256, %s35, [#allocation6], 64, 64, 4
    $region9: #{tpu_custom_call.1} parent=1 // pred_fallthru
      _
    // Predicated region
    $region10: #{tpu_custom_call.1} parent=1 // pred_check
      _
    $region11: #{tpu_custom_call.1} parent=1 // pred_check_branch
      %42 = sbr.rel (0) target = $region13
    $region12: #{tpu_custom_call.1} parent=1 // pred_region
      _
    $region13: #{tpu_custom_call.1} parent=1 // pred_fallthru
      _
    // Predicated region
    $region14: #{tpu_custom_call.1} parent=1 // pred_check
      _
    $region15: #{tpu_custom_call.1} parent=1 // pred_check_branch
      %44 = sbr.rel (0) target = $region17
    $region16: #{tpu_custom_call.1} parent=1 // pred_region
      %46 = dma.done [#allocation3], 128
    $region17: #{tpu_custom_call.1} parent=1 // pred_fallthru
      _
    // Predicated region
    $region18: #{tpu_custom_call.1} parent=1 // pred_check
      _
    $region19: #{tpu_custom_call.1} parent=1 // pred_check_branch
      %48 = sbr.rel (0) target = $region21
    $region20: #{tpu_custom_call.1} parent=1 // pred_region
      %50 = dma.done [#allocation6], 256
    $region21: #{tpu_custom_call.1} parent=1 // pred_fallthru
      _
    %v52 = vld [vmem:[#allocation2] sm:$0xf]
    %v53 = vld [vmem:[#allocation2 + $0x4] sm:$0xf]
    %v54 = vld [vmem:[#allocation5] sm:$0xf]
    %v55 = vld [vmem:[#allocation5 + $0x4] sm:$0xf]
    %v56 = vld [vmem:[#allocation5 + $0x8] sm:$0xf]
    %v57 = vld [vmem:[#allocation5 + $0xc] sm:$0xf]
    %v58 = vld [vmem:[%s2] sm:$0x1]
    %v60 = vperm.slane %v58, 0
    %v64 = vunpack.c.l.b16 %v52
    %v65 = vunpack.c.l.b16 %v53
    %v66 = vpack.c.b16 %v65, %v64
    %v71 = vunpack.c.l.b16 %v54
    %v72 = vunpack.c.l.b16 %v55
    %v73 = vunpack.c.l.b16 %v56
    %v74 = vunpack.c.l.b16 %v57
    %v75 = vpack.c.b16 %v72, %v71
    %v76 = vpack.c.b16 %v74, %v73
    %vm79 = vcmask 261120
    %v81 = vsel %vm79, %v66, 0
    %83 = vmatpush.bf16.msra.mxu0 0
    %84 = vmatpush.bf16.msra.mxu0 0
    %85 = vmatpush.bf16.msra.mxu0 0
    %86 = vmatpush.bf16.msra.mxu0 0
    %87 = vmatpush.bf16.msra.mxu0 0
    %88 = vmatpush.bf16.msra.mxu0 0
    %89 = vmatpush.bf16.msra.mxu0 %v76
    %90 = vmatpush.bf16.msra.mxu0 %v75
    %91 = vmatmul.bf16.gmra.mxu0 %v81
    %v92 = vpop.f32.mrf.mxu0
    %v93 = vadd.f32 %v60, %v92
    %v94 = vpop.f32.mrf.mxu0
    %v95 = vadd.f32 %v60, %v94
    %96 = vdwg.mxu0
    %v97 = vpack.c.bf16 %v93, %v93
    %v98 = vpack.c.bf16 %v95, %v95
    %vm99 = vcmask 257024
    %100 = vst.msk [vmem:[#allocation7] sm:$0xf] %vm99, %v97
    %101 = vst.msk [vmem:[#allocation7 + $0x4] sm:$0xf] %vm99, %v98
    %104 = vrot.lane.b32.xlu0 %v97, 96
    %v105 = vpop.permute.xlu0 %104
    %106 = vrot.lane.b32.xlu0 %v98, 96
    %v107 = vpop.permute.xlu0 %106
    %110 = vst.msk [vmem:[#allocation8] sm:$0xf] %vm99, %v105
    %111 = vst.msk [vmem:[#allocation8 + $0x4] sm:$0xf] %vm99, %v107
    %112 = vrot.lane.b32.xlu0 %v97, 64
    %v113 = vpop.permute.xlu0 %112
    %114 = vrot.lane.b32.xlu0 %v98, 64
    %v115 = vpop.permute.xlu0 %114
    %118 = vst.msk [vmem:[#allocation10] sm:$0xf] %vm99, %v113
    %119 = vst.msk [vmem:[#allocation10 + $0x4] sm:$0xf] %vm99, %v115
    // Predicated region
    $region22: #{tpu_custom_call.1} parent=1 // pred_check
      _
    $region23: #{tpu_custom_call.1} parent=1 // pred_check_branch
      %121 = sbr.rel (0) target = $region25
    $region24: #{tpu_custom_call.1} parent=1 // pred_region
      %123 = vsyncadd [#allocation4], 0
      %s124 = sshll.u32 [#allocation7], 4
      %s125 = int_to_ptr.vmem [resolvable:$true] %s124
      %s126 = sshll.u32 %s3, 4
      %s127 = int_to_ptr.hbm [resolvable:$true] %s126
      %132 = dma.vmem_to_hbm [thread:$0]  %s125, 128, %s127, [#allocation4], 64, 64, 4
    $region25: #{tpu_custom_call.1} parent=1 // pred_fallthru
      _
    // Predicated region
    $region26: #{tpu_custom_call.1} parent=1 // pred_check
      _
    $region27: #{tpu_custom_call.1} parent=1 // pred_check_branch
      %134 = sbr.rel (0) target = $region29
    $region28: #{tpu_custom_call.1} parent=1 // pred_region
      %136 = vsyncadd [#allocation9], 0
      %s137 = sshll.u32 [#allocation8], 4
      %s138 = int_to_ptr.vmem [resolvable:$true] %s137
      %s139 = sshll.u32 %s4, 4
      %s140 = int_to_ptr.hbm [resolvable:$true] %s139
      %145 = dma.vmem_to_hbm [thread:$0]  %s138, 128, %s140, [#allocation9], 64, 64, 4
    $region29: #{tpu_custom_call.1} parent=1 // pred_fallthru
      _
    // Predicated region
    $region30: #{tpu_custom_call.1} parent=1 // pred_check
      _
    $region31: #{tpu_custom_call.1} parent=1 // pred_check_branch
      %147 = sbr.rel (0) target = $region33
    $region32: #{tpu_custom_call.1} parent=1 // pred_region
      %149 = vsyncadd [#allocation9], 0
      %s150 = sshll.u32 [#allocation10], 4
      %s151 = int_to_ptr.vmem [resolvable:$true] %s150
      %s152 = sshll.u32 %s5, 4
      %s153 = int_to_ptr.hbm [resolvable:$true] %s152
      %158 = dma.vmem_to_hbm [thread:$0]  %s151, 128, %s153, [#allocation9], 64, 64, 4
    $region33: #{tpu_custom_call.1} parent=1 // pred_fallthru
      _
    // Predicated region
    $region34: #{tpu_custom_call.1} parent=1 // pred_check
      _
    $region35: #{tpu_custom_call.1} parent=1 // pred_check_branch
      %160 = sbr.rel (0) target = $region37
    $region36: #{tpu_custom_call.1} parent=1 // pred_region
      %162 = dma.done [#allocation4], 128
    $region37: #{tpu_custom_call.1} parent=1 // pred_fallthru
      _
    // Predicated region
    $region38: #{tpu_custom_call.1} parent=1 // pred_check
      _
    $region39: #{tpu_custom_call.1} parent=1 // pred_check_branch
      %164 = sbr.rel (0) target = $region41
    $region40: #{tpu_custom_call.1} parent=1 // pred_region
      %166 = dma.done [#allocation9], 128
    $region41: #{tpu_custom_call.1} parent=1 // pred_fallthru
      _
    // Predicated region
    $region42: #{tpu_custom_call.1} parent=1 // pred_check
      _
    $region43: #{tpu_custom_call.1} parent=1 // pred_check_branch
      %168 = sbr.rel (0) target = $region45
    $region44: #{tpu_custom_call.1} parent=1 // pred_region
      %170 = dma.done [#allocation9], 128
    $region45: #{tpu_custom_call.1} parent=1 // pred_fallthru
      _
    %171 = vsyncpa [#allocation3], 1
    %172 = vsyncpa [#allocation6], 1
    %173 = vsyncpa [#allocation4], 1
    %174 = vsyncpa [#allocation9], 1

</llo_original>
